<compile_context>
chip_gen: v5e
topology: v5e:2x2
jax: 0.10.0
libtpu: 0.0.40
codegen_flags: <defaults>
</compile_context>

<pallas_src>
import jax
import jax.numpy as jnp
from jax.experimental import pallas as pl
from jax.experimental.pallas import tpu as pltpu


def _round_up(x: int, m: int) -> int:
    return ((x + m - 1) // m) * m


# --------------------------------------------------------------------------
# Generation-aware VMEM sizing
# --------------------------------------------------------------------------
def _vmem_plan():
    """Return (vmem_limit_bytes, tiling_budget_bytes) for this chip."""
    try:
        phys = int(pltpu.get_tpu_info().vmem_capacity_bytes)
    except Exception:
        phys = 64 * 1024 * 1024          # conservative: v7x has the smallest VMEM
    vmem_limit = min(phys - 16 * 1024 * 1024, 112 * 1024 * 1024)
    vmem_limit = max(vmem_limit, 32 * 1024 * 1024)
    budget = int(vmem_limit * 0.85)       # headroom for compiler-internal scratch
    return vmem_limit, budget


def _plan_moe(num_tokens, hidden, ffn, n_exp, dtype, budget):
    """Pick (token_block, weights_resident) from a VMEM budget."""
    dtb = jnp.dtype(dtype).itemsize
    tokens8 = _round_up(max(num_tokens, 8), 8)
    w_exp = (2 * hidden * ffn + ffn * hidden + hidden) * dtb
    # Per-token VMEM: double-buffered x/res/out tiles + f32 combine weight (x2)
    # + f32 accumulator scratch + f32 gate/up/silu*up temporaries.
    per_tok = 2 * (3 * hidden * dtb + 4) + hidden * 4 + 3 * ffn * 4

    # Weight residency (assume the pipeline may still double-buffer -> 2x).
    resident = (2 * n_exp * w_exp + 256 * per_tok) <= budget
    w_vmem = (2 * n_exp * w_exp) if resident else (2 * w_exp)

    avail = budget - w_vmem
    if avail <= 256 * per_tok:
        # Weight working set dominates: keep an MXU-friendly token block anyway
        # (never collapse tm).  TODO(synk): F-tiling would be the right fix here.
        tm = 256
    else:
        tm = min(int(avail // per_tok), 1024)
        tm = max(256, (tm // 256) * 256)

    if tokens8 <= 256:
        tm = tokens8                              # tiny workload -> single block
    else:
        # Keep >= 2 token blocks so the "parallel" axis can shard across the two
        # TensorCores on v7x.
        tm = min(tm, _round_up(tokens8 // 2, 8))
    return tm, resident


# --------------------------------------------------------------------------
# Kernel 1: router logits  (x @ Wr^T), f32 accumulate
# --------------------------------------------------------------------------
def _router_kernel(x_ref, w_ref, o_ref):
    o_ref[...] = jax.lax.dot_general(
        x_ref[...], w_ref[...], (((1,), (1,)), ((), ())),
        preferred_element_type=jnp.float32)


# --------------------------------------------------------------------------
# Kernel 2: dense MoE experts + weighted combine + residual add
# --------------------------------------------------------------------------
def _expert_math(x, gw, uw, dw, db):
    g = jax.lax.dot_general(x, gw, (((1,), (0,)), ((), ())),
                            preferred_element_type=jnp.float32)
    u = jax.lax.dot_general(x, uw, (((1,), (0,)), ((), ())),
                            preferred_element_type=jnp.float32)
    h = (g * jax.nn.sigmoid(g)) * u                       # SiLU(gate) * up, f32
    y = jax.lax.dot_general(h.astype(dw.dtype), dw, (((1,), (0,)), ((), ())),
                            preferred_element_type=jnp.float32)
    return y + db.astype(jnp.float32)                     # (tm, H) + (1, H)


def _moe_kernel_resident(x_ref, gw_ref, uw_ref, dw_ref, db_ref, cw_ref, res_ref,
                         out_ref, acc_ref):
    # Weights are resident in VMEM (constant block index); slice expert e here.
    e = pl.program_id(1)

    @pl.when(e == 0)
    def _():
        # Fold dropout_add (p=0, eval) residual into the accumulator init.
        acc_ref[...] = res_ref[...].astype(jnp.float32)

    y = _expert_math(x_ref[...], gw_ref[e], uw_ref[e], dw_ref[e], db_ref[e])
    acc_ref[...] += cw_ref[...] * y                       # (tm,1) f32 * (tm,H) f32

    @pl.when(e == pl.num_programs(1) - 1)
    def _():
        out_ref[...] = acc_ref[...].astype(out_ref.dtype)


def _moe_kernel_streamed(x_ref, gw_ref, uw_ref, dw_ref, db_ref, cw_ref, res_ref,
                         out_ref, acc_ref):
    # Per-expert weight slabs streamed by the BlockSpec pipeline.
    e = pl.program_id(1)

    @pl.when(e == 0)
    def _():
        acc_ref[...] = res_ref[...].astype(jnp.float32)

    y = _expert_math(x_ref[...], gw_ref[...], uw_ref[...], dw_ref[...], db_ref[...])
    acc_ref[...] += cw_ref[...] * y

    @pl.when(e == pl.num_programs(1) - 1)
    def _():
        out_ref[...] = acc_ref[...].astype(out_ref.dtype)


# --------------------------------------------------------------------------
# Wrapper
# --------------------------------------------------------------------------
def switch_mlp_forward(hidden_states, residual, params, top_k, expert_limit=None,
                       force_resident=None):
    """Returns (output, router_logits) matching SwitchMLP.forward semantics."""
    b, s, hidden = hidden_states.shape
    n_exp, _, ffn = params["gate_w"].shape
    num_tokens = b * s

    vmem_limit, budget = _vmem_plan()
    tm, resident = _plan_moe(num_tokens, hidden, ffn, n_exp,
                             hidden_states.dtype, budget)
    if force_resident is not None:
        resident = force_resident

    x2d = hidden_states.reshape(num_tokens, hidden)
    res2d = residual.reshape(num_tokens, hidden)
    t_pad = _round_up(num_tokens, tm)
    pad = t_pad - num_tokens
    x_p = jnp.pad(x2d, ((0, pad), (0, 0)))
    res_p = jnp.pad(res2d, ((0, pad), (0, 0)))

    # --- router logits (Pallas, f32) ---
    logits_f32 = pl.pallas_call(
        _router_kernel,
        out_shape=jax.ShapeDtypeStruct((t_pad, n_exp), jnp.float32),
        grid=(t_pad // tm,),
        in_specs=[pl.BlockSpec((tm, hidden), lambda i: (i, 0)),
                  pl.BlockSpec((n_exp, hidden), lambda i: (0, 0))],
        out_specs=pl.BlockSpec((tm, n_exp), lambda i: (i, 0)),
        compiler_params=pltpu.CompilerParams(
            dimension_semantics=("parallel",),
            vmem_limit_bytes=vmem_limit),
    )(x_p, params["router_w"])[:num_tokens]

    if expert_limit is not None:
        emask = jnp.arange(n_exp) < expert_limit
        # NOTE: as in torch, expert_limit < top_k would make softmax-over(-inf)
        # NaN; callers are expected to keep expert_limit >= top_k.
        logits_f32 = jnp.where(emask[None, :], logits_f32, -jnp.inf)
    router_logits = logits_f32.astype(hidden_states.dtype)   # returned (torch dtype)

    # --- top-k routing + softmax (tiny; plain JAX) ---
    # TODO(synk): top-k routing has no clean Pallas equivalent; done in JAX.
    topk_w, topk_i = jax.lax.top_k(logits_f32, top_k)
    topk_w = jax.nn.softmax(topk_w.astype(jnp.float32), axis=-1)
    combine = jnp.sum(jax.nn.one_hot(topk_i, n_exp, dtype=jnp.float32)
                      * topk_w[..., None], axis=1)            # (tokens, E), f32
    # Pre-extract per-expert column -> (E, t_pad, 1): kernel reads a ready (tm,1)
    # f32 tile instead of doing iota/where/lane-reduce every grid step.
    combine_t = jnp.pad(combine, ((0, pad), (0, 0))).T[:, :, None]

    if resident:
        weight_specs = [
            pl.BlockSpec((n_exp, hidden, ffn), lambda i, e: (0, 0, 0)),   # gate W
            pl.BlockSpec((n_exp, hidden, ffn), lambda i, e: (0, 0, 0)),   # up W
            pl.BlockSpec((n_exp, ffn, hidden), lambda i, e: (0, 0, 0)),   # down W
            pl.BlockSpec((n_exp, 1, hidden), lambda i, e: (0, 0, 0)),     # down b
        ]
        kernel = _moe_kernel_resident
    else:
        weight_specs = [
            pl.BlockSpec((None, hidden, ffn), lambda i, e: (e, 0, 0)),    # gate W
            pl.BlockSpec((None, hidden, ffn), lambda i, e: (e, 0, 0)),    # up W
            pl.BlockSpec((None, ffn, hidden), lambda i, e: (e, 0, 0)),    # down W
            pl.BlockSpec((None, 1, hidden), lambda i, e: (e, 0, 0)),      # down b
        ]
        kernel = _moe_kernel_streamed

    out_p = pl.pallas_call(
        kernel,
        out_shape=jax.ShapeDtypeStruct((t_pad, hidden), hidden_states.dtype),
        grid_spec=pltpu.PrefetchScalarGridSpec(
            num_scalar_prefetch=0,
            grid=(t_pad // tm, n_exp),
            in_specs=[pl.BlockSpec((tm, hidden), lambda i, e: (i, 0))]         # x
                     + weight_specs
                     + [pl.BlockSpec((None, tm, 1), lambda i, e: (e, i, 0)),   # combine
                        pl.BlockSpec((tm, hidden), lambda i, e: (i, 0))],      # residual
            out_specs=pl.BlockSpec((tm, hidden), lambda i, e: (i, 0)),
            scratch_shapes=[pltpu.VMEM((tm, hidden), jnp.float32)],
        ),
        compiler_params=pltpu.CompilerParams(
            dimension_semantics=("parallel", "arbitrary"),
            vmem_limit_bytes=vmem_limit),
    )(x_p, params["gate_w"], params["up_w"], params["down_w"], params["down_b"],
      combine_t, res_p)

    output = out_p[:num_tokens].reshape(b, s, hidden)
    return output, router_logits


# --------------------------------------------------------------------------
# Pure-JAX reference (mirrors the PyTorch forward, dense-equivalent)
# --------------------------------------------------------------------------
def _reference_forward(hidden_states, residual, params, top_k, expert_limit=None):
    b, s, hidden = hidden_states.shape
    n_exp = params["router_w"].shape[0]
    x = hidden_states.reshape(-1, hidden)
    logits = (x @ params["router_w"].T).astype(jnp.float32)
    if expert_limit is not None:
        emask = jnp.arange(n_exp) < expert_limit
        logits = jnp.where(emask[None, :], logits, -jnp.inf)
    topk_w, topk_i = jax.lax.top_k(logits, top_k)
    topk_w = jax.nn.softmax(topk_w.astype(jnp.float32), axis=-1)
    out = jnp.zeros(x.shape, jnp.float32)
    for e in range(n_exp):
        g = x @ params["gate_w"][e]
        u = x @ params["up_w"][e]
        y = (jax.nn.silu(g) * u) @ params["down_w"][e] + params["down_b"][e, 0]
        w_e = jnp.sum(jnp.where(topk_i == e, topk_w, 0.0), axis=1, keepdims=True)
        out = out + w_e * y
    out = out.reshape(b, s, hidden).astype(hidden_states.dtype) + residual
    return out, logits.astype(hidden_states.dtype)


if __name__ == "__main__":
    # Small shapes consistent with the module: batch=2, seq=8, hidden=32,
    # ffn_hidden=64, num_moe_experts=4, top_k=2.
    B, S, H, F, E, TOPK = 2, 8, 32, 64, 4, 2

    key = jax.random.PRNGKey(0)
    ks = jax.random.split(key, 7)
    hidden_states = jax.random.normal(ks[0], (B, S, H), dtype=jnp.float32)
    residual = jax.random.normal(ks[1], (B, S, H), dtype=jnp.float32)
    params = {
        "router_w": 0.05 * jax.random.normal(ks[2], (E, H), dtype=jnp.float32),
        "gate_w":   0.05 * jax.random.normal(ks[3], (E, H, F), dtype=jnp.float32),
        "up_w":     0.05 * jax.random.normal(ks[4], (E, H, F), dtype=jnp.float32),
        "down_w":   0.05 * jax.random.normal(ks[5], (E, F, H), dtype=jnp.float32),
        "down_b":   0.05 * jax.random.normal(ks[6], (E, 1, H), dtype=jnp.float32),
    }

    out_ref, logits_ref = _reference_forward(hidden_states, residual, params, TOPK, None)

    # Case 1: auto plan (resident weights at these shapes), no expert_limit.
    out, logits = switch_mlp_forward(hidden_states, residual, params, TOPK, None)
    out = jax.block_until_ready(out)
    logits = jax.block_until_ready(logits)
    assert out.shape == (B, S, H) and logits.shape == (B * S, E)
    assert jnp.allclose(out, out_ref, atol=2e-3, rtol=2e-3), "output mismatch (resident)"
    assert jnp.allclose(logits, logits_ref, atol=2e-3, rtol=2e-3), "logits mismatch"

    # Case 2: force the per-expert streamed-weights path.
    out_s, _ = switch_mlp_forward(hidden_states, residual, params, TOPK, None,
                                  force_resident=False)
    out_s = jax.block_until_ready(out_s)
    assert jnp.allclose(out_s, out_ref, atol=2e-3, rtol=2e-3), "output mismatch (streamed)"

    # Case 3: expert_limit masks out the last expert.
    out2, _ = switch_mlp_forward(hidden_states, residual, params, TOPK, 3)
    out2 = jax.block_until_ready(out2)
    out2_ref, _ = _reference_forward(hidden_states, residual, params, TOPK, 3)
    assert jnp.allclose(out2, out2_ref, atol=2e-3, rtol=2e-3), "output mismatch (limit)"

    print("KERNEL_OK")
</pallas_src>

<mosaic_0001>
module attributes {stable_mosaic.version = 11 : i64} {
  func.func @_router_kernel(%arg0: i32, %arg1: memref<16x32xf32, #tpu.memory_space<vmem>>, %arg2: memref<4x32xf32, #tpu.memory_space<vmem>>, %arg3: memref<16x4xf32, #tpu.memory_space<vmem>>) attributes {dimension_semantics = [#tpu.dimension_semantics<parallel>], iteration_bounds = array<i64: 1>, scalar_prefetch = 0 : i64, scratch_operands = 0 : i64, tpu.core_type = #tpu.core_type<tc>, window_params = [{transform_indices = @transform_0, window_bounds = array<i64: 16, 32>}, {pipeline_mode = #tpu.pipeline_mode<synchronous>, transform_indices = @transform_1, window_bounds = array<i64: 4, 32>}, {transform_indices = @transform_2, window_bounds = array<i64: 16, 4>}]} {
    %c0 = arith.constant 0 : index
    %c0_0 = arith.constant 0 : index
    %0 = vector.load %arg1[%c0, %c0_0] : memref<16x32xf32, #tpu.memory_space<vmem>>, vector<16x32xf32>
    %c0_1 = arith.constant 0 : index
    %c0_2 = arith.constant 0 : index
    %1 = vector.load %arg2[%c0_1, %c0_2] : memref<4x32xf32, #tpu.memory_space<vmem>>, vector<4x32xf32>
    %cst = arith.constant dense<0.000000e+00> : vector<16x4xf32>
    %2 = tpu.matmul %0, %1, %cst {dimension_numbers = #tpu.dot_dimension_numbers<[1], [1], [0], [0], [0, 0, 1, 0], [], []>} : vector<16x32xf32>, vector<4x32xf32>, vector<16x4xf32> -> vector<16x4xf32>
    %c0_3 = arith.constant 0 : index
    %c0_4 = arith.constant 0 : index
    %3 = vector.load %arg3[%c0_3, %c0_4] : memref<16x4xf32, #tpu.memory_space<vmem>>, vector<16x4xf32>
    tpu.vector_store %arg3[%c0_3, %c0_4], %2 {strides = array<i32>} : memref<16x4xf32, #tpu.memory_space<vmem>>, vector<16x4xf32>,
    return
  }
  func.func @transform_0(%arg0: i32) -> (i32, i32) {
    %c0_i32 = arith.constant 0 : i32
    %c0_i32_0 = arith.constant 0 : i32
    return %arg0, %c0_i32 : i32, i32
  }
  func.func @transform_1(%arg0: i32) -> (i32, i32) {
    %c0_i32 = arith.constant 0 : i32
    %c0_i32_0 = arith.constant 0 : i32
    %c0_i32_1 = arith.constant 0 : i32
    return %c0_i32, %c0_i32_0 : i32, i32
  }
  func.func @transform_2(%arg0: i32) -> (i32, i32) {
    %c0_i32 = arith.constant 0 : i32
    %c0_i32_0 = arith.constant 0 : i32
    return %arg0, %c0_i32 : i32, i32
  }
}

</mosaic_0001>

<llo_original>
// kernel: tpu_custom_call.1
$region0: #{tpu_custom_call.1}
  #allocation0 [shape = 'u32[]', space=smem, size = 0x4, offset = 0x4, fixed_abs, tag = 'smem constant byte address 0x4 - core index']
  #allocation1 [shape = 'u32[72,128]{1,0:T(1,128)}', space=vmem, size = 0x9000, scoped, tag = 'internal scratch']
  %s0 = inlined_call_operand.hbm [shape: f32[16,32], index: 0, kind: input, shape index: {}]
  %s1 = inlined_call_operand.hbm [shape: f32[4,32], index: 1, kind: input, shape index: {}]
  %s2 = inlined_call_operand.vmem [shape: f32[16,4], index: 2, kind: output, shape index: {}]
  %s3 = sld [smem:[#allocation0]]
  $region26: #{tpu_custom_call.1} parent=0
    _
  %s5 = ssub.s32 1, %s3
  %s6 = scalar_select 0, %s5, %s3
  $region1: #{tpu_custom_call.1} parent=0
    #allocation2 [shape = 'u8[8192]{0}', space=vmem, size = 0x2000, scoped, tag = 'input window, operand 0, single buffered']
    #allocation3 [shape = 's32[1]{0}', space=sflag, size = 0x4, scoped, tag = 'scoped memory for tpu_custom_call.1']
    #allocation4 [shape = 'u8[2048]{0}', space=vmem, size = 0x800, scoped, tag = 'input window, operand 1, single buffered']
    #allocation5 [shape = 's32[1]{0}', space=sflag, size = 0x4, scoped, tag = 'scoped memory for tpu_custom_call.1']
    %7 = vsyncpa [#allocation3], 0
    %8 = vsyncpa [#allocation5], 0
    // Predicated region
    $region2: #{tpu_custom_call.1} parent=1 // pred_check
      _
    $region3: #{tpu_custom_call.1} parent=1 // pred_check_branch
      %10 = sbr.rel (0) target = $region5
    $region4: #{tpu_custom_call.1} parent=1 // pred_region
      %12 = vsyncadd [#allocation3], 0
      %s13 = sshll.u32 %s0, 4
      %s14 = int_to_ptr.hbm [resolvable:$true] %s13
      %s15 = sshll.u32 [#allocation2], 4
      %s16 = int_to_ptr.vmem [resolvable:$true] %s15
      %21 = dma.hbm_to_vmem [thread:$0]  %s14, 256, %s16, [#allocation3], 128, 128, 8
    $region5: #{tpu_custom_call.1} parent=1 // pred_fallthru
      _
    // Predicated region
    $region6: #{tpu_custom_call.1} parent=1 // pred_check
      _
    $region7: #{tpu_custom_call.1} parent=1 // pred_check_branch
      %23 = sbr.rel (0) target = $region9
    $region8: #{tpu_custom_call.1} parent=1 // pred_region
      %25 = vsyncadd [#allocation5], 0
      %s27 = sshll.u32 %s1, 4
      %s28 = int_to_ptr.hbm [resolvable:$true] %s27
      %s29 = sshll.u32 [#allocation4], 4
      %s30 = int_to_ptr.vmem [resolvable:$true] %s29
      %32 = dma.hbm_to_vmem [thread:$0]  %s28, 64, %s30, [#allocation5]
    $region9: #{tpu_custom_call.1} parent=1 // pred_fallthru
      _
    // Predicated region
    $region10: #{tpu_custom_call.1} parent=1 // pred_check
      _
    $region11: #{tpu_custom_call.1} parent=1 // pred_check_branch
      %34 = sbr.rel (0) target = $region13
    $region12: #{tpu_custom_call.1} parent=1 // pred_region
      %36 = dma.done [#allocation3], 256
    $region13: #{tpu_custom_call.1} parent=1 // pred_fallthru
      _
    // Predicated region
    $region14: #{tpu_custom_call.1} parent=1 // pred_check
      _
    $region15: #{tpu_custom_call.1} parent=1 // pred_check_branch
      %38 = sbr.rel (0) target = $region17
    $region16: #{tpu_custom_call.1} parent=1 // pred_region
      %40 = dma.done [#allocation5], 64
    $region17: #{tpu_custom_call.1} parent=1 // pred_fallthru
      _
    %v41 = vld [vmem:[#allocation2] sm:$0xff]
    %v42 = vld [vmem:[#allocation2 + $0x8] sm:$0xff]
    %v43 = vld [vmem:[#allocation4] sm:$0xf]
    %vm44 = vcmask 261120
    %v46 = vsel %vm44, %v41, 0
    %v49 = vsel %vm44, %v42, 0
    %v52 = vsel %vm44, %v43, 0
    %54 = vmatpush.xpose.msra.mxu0 0.0
    %55 = vmatpush.xpose.msra.mxu0 0.0
    %56 = vmatpush.xpose.msra.mxu0 0.0
    %57 = vmatpush.xpose.msra.mxu0 0.0
    %58 = vmatpush.xpose.msra.mxu0 0.0
    %59 = vmatpush.xpose.msra.mxu0 0.0
    %60 = vmatpush.xpose.msra.mxu0 0.0
    %61 = vmatpush.xpose.msra.mxu0 0.0
    %62 = vmatpush.xpose.msra.mxu0 0.0
    %63 = vmatpush.xpose.msra.mxu0 0.0
    %64 = vmatpush.xpose.msra.mxu0 0.0
    %65 = vmatpush.xpose.msra.mxu0 0.0
    %66 = vmatpush.xpose.msra.mxu0 0.0
    %67 = vmatpush.xpose.msra.mxu0 0.0
    %68 = vmatpush.xpose.msra.mxu0 0.0
    %69 = vmatpush.xpose.msra.mxu0 %v52
    %70 = vmatmul.f32.gmra.mxu0 %v46
    %v71 = vpop.f32.mrf.mxu0
    %v72 = vadd.f32 0.0, %v71
    %73 = vmatmul.f32.gmra.mxu0 %v49
    %v74 = vpop.f32.mrf.mxu0
    %v75 = vadd.f32 0.0, %v74
    %76 = vdwg.mxu0
    %vm77 = vcmask 31744
    %78 = vst.msk [vmem:[%s2] sm:$0xff] %vm77, %v72
    %79 = vst.msk [vmem:[%s2 + $0x8] sm:$0xff] %vm77, %v75
    // Predicated region
    $region18: #{tpu_custom_call.1} parent=1 // pred_check
      _
    $region19: #{tpu_custom_call.1} parent=1 // pred_check_branch
      %81 = sbr.rel (0) target = $region21
    $region20: #{tpu_custom_call.1} parent=1 // pred_region
      _
    $region21: #{tpu_custom_call.1} parent=1 // pred_fallthru
      _
    // Predicated region
    $region22: #{tpu_custom_call.1} parent=1 // pred_check
      _
    $region23: #{tpu_custom_call.1} parent=1 // pred_check_branch
      %83 = sbr.rel (0) target = $region25
    $region24: #{tpu_custom_call.1} parent=1 // pred_region
      _
    $region25: #{tpu_custom_call.1} parent=1 // pred_fallthru
      _
    %84 = vsyncpa [#allocation3], 1
    %85 = vsyncpa [#allocation5], 1

</llo_original>
